<compile_context>
chip_gen: v6e
topology: v6e:2x2x1
jax: 0.10.0
libtpu: 0.0.40
codegen_flags: <defaults>
</compile_context>

<pallas_src>
import jax
import jax.numpy as jnp
from jax.experimental import pallas as pl
from jax.experimental.pallas import tpu as pltpu

_MIN_LANES = 128


def _round_up(a, m):
    return ((a + m - 1) // m) * m


def _static_scalar(v):
    """float(v) if v is a compile-time constant, else None (traced value)."""
    try:
        return float(v)
    except Exception:
        return None


def _target_block_bytes():
    """Per-buffer block-size target in bytes, tuned per TPU generation."""
    try:
        kind = jax.devices()[0].device_kind.lower()
    except Exception:
        kind = ""
    if "v5" in kind:
        return 2 << 20   # v5e: 16 MiB scoped-VMEM default -> keep 4x block small
    if "v6" in kind:
        return 4 << 20   # v6e: 32 MiB scoped-VMEM default
    if "v7" in kind or "7x" in kind:
        return 8 << 20   # v7x: 3.2 TB/s HBM -> big blocks to amortize step cost
    return 4 << 20


def _make_const_kernel(w, b):
    # w, b baked as Python scalars (weak-typed): compute stays in x.dtype,
    # exact PyTorch rounding order (x + b) * w - b.
    def kernel(x_ref, o_ref):
        o_ref[...] = (x_ref[...] + b) * w - b
    return kernel


def _smem_kernel(wb_ref, x_ref, o_ref):
    # Traced (e.g. learned) scalars read once per block from SMEM.
    x = x_ref[...]
    w = wb_ref[0].astype(x.dtype)
    b = wb_ref[1].astype(x.dtype)
    o_ref[...] = (x + b) * w - b


def transformation(x, w, b, *, block_bytes=None, alias_input=False):
    """Apply (x + b) * w - b elementwise via a Pallas TPU kernel."""
    orig_shape = x.shape
    dtype = x.dtype
    total = x.size
    if total == 0:
        return x

    w_s = _static_scalar(w)
    b_s = _static_scalar(b)
    static_params = (w_s is not None) and (b_s is not None)

    def _inline_fn(t):
        if static_params:
            return ((t + b_s) * w_s - b_s).astype(dtype)
        return ((t + b) * w - b).astype(dtype)

    bulk = (total // _MIN_LANES) * _MIN_LANES
    tail = total - bulk
    if bulk == 0:
        # Smaller than one 128-lane row: a kernel launch is not worth it.
        return _inline_fn(x.reshape(-1)).reshape(orig_shape)

    x_flat = x.reshape(-1)
    if tail:
        x_bulk_flat = x_flat[:bulk]
        x_tail = x_flat[bulk:]
    else:
        x_bulk_flat = x_flat
        x_tail = None

    itemsize = jnp.dtype(dtype).itemsize
    sublane = max(8, 32 // max(1, itemsize))   # 8 (f32) / 16 (bf16) / 32 (i8)

    # Lane-dense slab: widest lane width that divides the bulk while keeping
    # at least one sublane group of rows.
    lane_w = _MIN_LANES
    for cand in (1024, 512, 256):
        if bulk % cand == 0 and (bulk // cand) >= sublane:
            lane_w = cand
            break
    n_rows = bulk // lane_w
    x2d = x_bulk_flat.reshape(n_rows, lane_w)

    # Block selection: as big as the per-generation byte budget allows, but
    # capped so the grid keeps >= ~4 steps (pipelining + v7x 2-TC sharding).
    if block_bytes is None:
        block_bytes = _target_block_bytes()
    bytes_per_row = lane_w * itemsize
    row_budget = max(sublane, ((block_bytes // bytes_per_row) // sublane) * sublane)
    desired_steps = 4
    rows_per_step = _round_up(pl.cdiv(n_rows, desired_steps), sublane)
    block_rows = min(row_budget, rows_per_step)
    if block_rows >= n_rows:
        block_rows = n_rows            # tiny input: one full-array block
    grid = (pl.cdiv(n_rows, block_rows),)

    blk_bytes = block_rows * lane_w * itemsize
    # in + out, double-buffered = ~4x block; explicit limit so large tiles
    # compile on v5e (16 MiB scoped default) and stay well under v7x's 64 MiB.
    vmem_limit = int(min(48 << 20, max(16 << 20, 4 * blk_bytes + (4 << 20))))

    x_spec = pl.BlockSpec((block_rows, lane_w), lambda i: (i, 0))
    o_spec = pl.BlockSpec((block_rows, lane_w), lambda i: (i, 0))
    cparams = pltpu.CompilerParams(
        dimension_semantics=("parallel",),
        vmem_limit_bytes=vmem_limit,
    )
    # TODO(synk): on v7x with VMEM headroom, pipeline_mode=pl.Buffered(3) on the
    # input spec can hide DMA-issue jitter for a few extra %.

    if static_params:
        kernel = _make_const_kernel(w_s, b_s)
        in_specs = [x_spec]
        args = (x2d,)
        aliases = {0: 0}
    else:
        wb = jnp.stack([jnp.asarray(w), jnp.asarray(b)]).astype(jnp.float32)
        kernel = _smem_kernel
        in_specs = [pl.BlockSpec(memory_space=pltpu.MemorySpace.SMEM), x_spec]
        args = (wb, x2d)
        aliases = {1: 0}

    out2d = pl.pallas_call(
        kernel,
        out_shape=jax.ShapeDtypeStruct((n_rows, lane_w), dtype),
        grid=grid,
        in_specs=in_specs,
        out_specs=o_spec,
        compiler_params=cparams,
        input_output_aliases=aliases if alias_input else {},
    )(*args)

    out_flat = out2d.reshape(-1)
    if tail:
        out_flat = jnp.concatenate([out_flat, _inline_fn(x_tail)])
    return out_flat.reshape(orig_shape)


if __name__ == "__main__":
    key = jax.random.PRNGKey(0)

    # Module parameters (given at __init__ in the PyTorch module).
    w = 1.5
    b = -0.25

    # 1) Small NCHW input, static w/b baked into the kernel.
    x = jax.random.normal(key, (2, 4, 16, 16), dtype=jnp.float32)
    out = jax.block_until_ready(transformation(x, w, b))
    ref = (x + b) * w - b
    assert out.shape == x.shape and out.dtype == x.dtype
    assert jnp.allclose(out, ref, atol=1e-6, rtol=1e-6)

    # 2) Multi-block path: 4 pipelined "parallel" grid steps incl. a partial
    #    trailing block, lane width widened to 1024.
    k2 = jax.random.fold_in(key, 1)
    x2 = jax.random.normal(k2, (2, 3, 64, 160), dtype=jnp.float32)
    out2 = jax.block_until_ready(transformation(x2, w, b))
    ref2 = (x2 + b) * w - b
    assert jnp.allclose(out2, ref2, atol=1e-6, rtol=1e-6)

    # 3) Ragged path (size % 128 != 0): aligned bulk through the kernel,
    #    <128-element tail inline — no full-array pad/unpad copies.
    k3 = jax.random.fold_in(key, 2)
    x3 = jax.random.normal(k3, (2, 3, 5, 7), dtype=jnp.float32)  # 210 elements
    out3 = jax.block_until_ready(transformation(x3, w, b))
    ref3 = (x3 + b) * w - b
    assert out3.shape == x3.shape
    assert jnp.allclose(out3, ref3, atol=1e-6, rtol=1e-6)

    # 4) Traced w/b under jit -> SMEM scalar path + input/output aliasing
    #    (safe/free inside jit where the reshaped input dies after the call).
    f = jax.jit(lambda xx, ww, bb: transformation(xx, ww, bb, alias_input=True))
    out4 = jax.block_until_ready(f(x, jnp.float32(w), jnp.float32(b)))
    assert jnp.allclose(out4, ref, atol=1e-6, rtol=1e-6)

    print("KERNEL_OK")
</pallas_src>

<mosaic_0001>
module attributes {stable_mosaic.version = 11 : i64} {
  func.func @kernel(%arg0: i32, %arg1: memref<8x256xf32, #tpu.memory_space<vmem>>, %arg2: memref<8x256xf32, #tpu.memory_space<vmem>>) attributes {dimension_semantics = [#tpu.dimension_semantics<parallel>], iteration_bounds = array<i64: 1>, scalar_prefetch = 0 : i64, scratch_operands = 0 : i64, tpu.core_type = #tpu.core_type<tc>, window_params = [{transform_indices = @transform_0, window_bounds = array<i64: 8, 256>}, {transform_indices = @transform_1, window_bounds = array<i64: 8, 256>}]} {
    %c0 = arith.constant 0 : index
    %c0_0 = arith.constant 0 : index
    %0 = vector.load %arg1[%c0, %c0_0] : memref<8x256xf32, #tpu.memory_space<vmem>>, vector<8x256xf32>
    %cst = arith.constant -2.500000e-01 : f32
    %1 = vector.broadcast %cst : f32 to vector<8x256xf32>
    %2 = arith.addf %0, %1 : vector<8x256xf32>
    %cst_1 = arith.constant 1.500000e+00 : f32
    %3 = vector.broadcast %cst_1 : f32 to vector<8x256xf32>
    %4 = arith.mulf %2, %3 : vector<8x256xf32>
    %cst_2 = arith.constant -2.500000e-01 : f32
    %5 = vector.broadcast %cst_2 : f32 to vector<8x256xf32>
    %6 = arith.subf %4, %5 : vector<8x256xf32>
    %c0_3 = arith.constant 0 : index
    %c0_4 = arith.constant 0 : index
    %7 = vector.load %arg2[%c0_3, %c0_4] : memref<8x256xf32, #tpu.memory_space<vmem>>, vector<8x256xf32>
    tpu.vector_store %arg2[%c0_3, %c0_4], %6 {strides = array<i32>} : memref<8x256xf32, #tpu.memory_space<vmem>>, vector<8x256xf32>,
    return
  }
  func.func @transform_0(%arg0: i32) -> (i32, i32) {
    %c0_i32 = arith.constant 0 : i32
    %c0_i32_0 = arith.constant 0 : i32
    return %arg0, %c0_i32 : i32, i32
  }
  func.func @transform_1(%arg0: i32) -> (i32, i32) {
    %c0_i32 = arith.constant 0 : i32
    %c0_i32_0 = arith.constant 0 : i32
    return %arg0, %c0_i32 : i32, i32
  }
}

</mosaic_0001>

<llo_original>
// kernel: tpu_custom_call.1
$region0: #{tpu_custom_call.1}
  #allocation0 [shape = 'u32[]', space=smem, size = 0x4, offset = 0x4, fixed_abs, tag = 'smem constant byte address 0x4 - core index']
  #allocation1 [shape = 'u32[144,128]{1,0:T(1,128)}', space=vmem, size = 0x12000, scoped, tag = 'internal scratch']
  %s0 = inlined_call_operand.hbm [shape: f32[8,256], index: 0, kind: input, shape index: {}]
  %s1 = inlined_call_operand.hbm [shape: f32[8,256], index: 1, kind: output, shape index: {}]
  %s2 = sld [smem:[#allocation0]]
  $region18: #{tpu_custom_call.1} parent=0
    _
  %s4 = ssub.s32 1, %s2
  %s5 = scalar_select 0, %s4, %s2
  $region1: #{tpu_custom_call.1} parent=0
    #allocation2 [shape = 'u8[8192]{0}', space=vmem, size = 0x2000, scoped, tag = 'input window, operand 0, single buffered']
    #allocation3 [shape = 's32[1]{0}', space=sflag, size = 0x4, scoped, tag = 'scoped memory for tpu_custom_call.1']
    #allocation4 [shape = 's32[1]{0}', space=sflag, size = 0x4, scoped, tag = 'scoped memory for tpu_custom_call.1']
    #allocation5 [shape = 'u8[8192]{0}', space=vmem, size = 0x2000, scoped, tag = 'output window, operand 0, single buffered']
    %6 = vsyncpa [#allocation3], 0
    %7 = vsyncpa [#allocation4], 0
    // Predicated region
    $region2: #{tpu_custom_call.1} parent=1 // pred_check
      _
    $region3: #{tpu_custom_call.1} parent=1 // pred_check_branch
      %9 = sbr.rel (0) target = $region5
    $region4: #{tpu_custom_call.1} parent=1 // pred_region
      %s11 = ssub.s32 256, 256
      %12 = vsyncadd [#allocation3], %s11
      %s14 = sshll.u32 [#allocation2], 4
      %s15 = int_to_ptr.vmem [resolvable:$true] %s14
      %17 = dma.hbm_to_vmem [thread:$0]  %s0, 256, %s15, [#allocation3]
    $region5: #{tpu_custom_call.1} parent=1 // pred_fallthru
      _
    // Predicated region
    $region6: #{tpu_custom_call.1} parent=1 // pred_check
      _
    $region7: #{tpu_custom_call.1} parent=1 // pred_check_branch
      %19 = sbr.rel (0) target = $region9
    $region8: #{tpu_custom_call.1} parent=1 // pred_region
      %20 = dma.done [#allocation3], 256
    $region9: #{tpu_custom_call.1} parent=1 // pred_fallthru
      _
    %v21 = vld [vmem:[#allocation2] sm:$0xff]
    %v22 = vld [vmem:[#allocation2 + $0x8] sm:$0xff]
    %v23 = vadd.f32 %v21, -0.25
    %v24 = vadd.f32 %v22, -0.25
    %v25 = vmul.f32 %v23, 1.5
    %v26 = vmul.f32 %v24, 1.5
    %v27 = vsub.f32 %v25, -0.25
    %v28 = vsub.f32 %v26, -0.25
    %29 = vst [vmem:[#allocation5] sm:$0xff] %v27
    %30 = vst [vmem:[#allocation5 + $0x8] sm:$0xff] %v28
    // Predicated region
    $region10: #{tpu_custom_call.1} parent=1 // pred_check
      _
    $region11: #{tpu_custom_call.1} parent=1 // pred_check_branch
      %32 = sbr.rel (0) target = $region13
    $region12: #{tpu_custom_call.1} parent=1 // pred_region
      %s34 = ssub.s32 256, 256
      %35 = vsyncadd [#allocation4], %s34
      %s37 = sshll.u32 [#allocation5], 4
      %s38 = int_to_ptr.vmem [resolvable:$true] %s37
      %40 = dma.vmem_to_hbm [thread:$0]  %s38, 256, %s1, [#allocation4]
    $region13: #{tpu_custom_call.1} parent=1 // pred_fallthru
      _
    // Predicated region
    $region14: #{tpu_custom_call.1} parent=1 // pred_check
      _
    $region15: #{tpu_custom_call.1} parent=1 // pred_check_branch
      %42 = sbr.rel (0) target = $region17
    $region16: #{tpu_custom_call.1} parent=1 // pred_region
      %43 = dma.done [#allocation4], 256
    $region17: #{tpu_custom_call.1} parent=1 // pred_fallthru
      _
    %44 = vsyncpa [#allocation3], 1
    %45 = vsyncpa [#allocation4], 1

</llo_original>
